<compile_context>
chip_gen: v5e
topology: v5e:2x2
jax: 0.10.0
libtpu: 0.0.40
codegen_flags: <defaults>
</compile_context>

<pallas_src>
import jax
import jax.numpy as jnp
from jax.experimental import pallas as pl
from jax.experimental.pallas import tpu as pltpu

IN_DIM = 10
HID_DIM = 20
OUT_DIM = 5


def _round_up(n, m):
    return (n + m - 1) // m * m


def mlp_kernel(x_ref, w1_ref, b1_ref, w2_ref, b2_ref, o_ref):
    # fc1: (TB, 10) @ (10, 20), f32 accumulate; bias + ReLU epilogue on the VPU.
    h = jnp.dot(x_ref[...], w1_ref[...], preferred_element_type=jnp.float32)
    h = jnp.maximum(h + b1_ref[...], 0.0)
    # fc2: (TB, 20) @ (20, 5), f32 accumulate; bias epilogue.
    y = jnp.dot(h, w2_ref[...], preferred_element_type=jnp.float32)
    o_ref[...] = (y + b2_ref[...]).astype(o_ref.dtype)


def simple_model_forward(x, w1, b1, w2, b2, *, tb=4096):
    """x: (B, 10) f32; w1: (10, 20); b1: (20,); w2: (20, 5); b2: (5,). Returns (B, 5) f32."""
    B = x.shape[0]
    Bp8 = max(8, _round_up(B, 8))          # sublane-aligned batch
    TB = min(tb, Bp8)                      # batch tile (multiple of 8)
    # v7x megacore: if >=16 rows would all land in a single tile, split into two
    # balanced steps so both TensorCores get work (harmless on v5e/v6e).
    if Bp8 >= 16 and Bp8 <= tb:
        TB = _round_up(pl.cdiv(Bp8, 2), 8)
    TB = max(TB, 8)
    Bp = _round_up(Bp8, TB)

    # Only the batch dim is padded (with zero rows); feature dims stay narrow.
    xp = x if Bp == B else jnp.zeros((Bp, IN_DIM), x.dtype).at[:B].set(x)
    b1r = b1.reshape(1, HID_DIM).astype(jnp.float32)
    b2r = b2.reshape(1, OUT_DIM).astype(jnp.float32)

    grid = (Bp // TB,)
    flops = 2 * Bp * (IN_DIM * HID_DIM + HID_DIM * OUT_DIM)
    bytes_accessed = 4 * (Bp * IN_DIM + IN_DIM * HID_DIM + HID_DIM
                          + HID_DIM * OUT_DIM + OUT_DIM + Bp * OUT_DIM)

    out = pl.pallas_call(
        mlp_kernel,
        out_shape=jax.ShapeDtypeStruct((Bp, OUT_DIM), jnp.float32),
        grid=grid,
        in_specs=[
            pl.BlockSpec((TB, IN_DIM), lambda i: (i, 0)),        # x tile (pipelined)
            pl.BlockSpec((IN_DIM, HID_DIM), lambda i: (0, 0)),   # w1 (VMEM-resident)
            pl.BlockSpec((1, HID_DIM), lambda i: (0, 0)),        # b1 (VMEM-resident)
            pl.BlockSpec((HID_DIM, OUT_DIM), lambda i: (0, 0)),  # w2 (VMEM-resident)
            pl.BlockSpec((1, OUT_DIM), lambda i: (0, 0)),        # b2 (VMEM-resident)
        ],
        out_specs=pl.BlockSpec((TB, OUT_DIM), lambda i: (i, 0)),
        compiler_params=pltpu.CompilerParams(
            dimension_semantics=("parallel",)),                  # megacore on v7x
        cost_estimate=pl.CostEstimate(
            flops=flops, transcendentals=0, bytes_accessed=bytes_accessed),
    )(xp, w1, b1r, w2, b2r)

    # Drop any padded batch rows (padded rows hold relu(b1)@w2+b2 garbage).
    return out if Bp == B else out[:B]


def init_params(key):
    # Matches nn.Linear default init: U(-1/sqrt(fan_in), 1/sqrt(fan_in)).
    k1, k2, k3, k4 = jax.random.split(key, 4)
    lim1 = 1.0 / jnp.sqrt(IN_DIM)
    lim2 = 1.0 / jnp.sqrt(HID_DIM)
    w1 = jax.random.uniform(k1, (IN_DIM, HID_DIM), jnp.float32, -lim1, lim1)
    b1 = jax.random.uniform(k2, (HID_DIM,), jnp.float32, -lim1, lim1)
    w2 = jax.random.uniform(k3, (HID_DIM, OUT_DIM), jnp.float32, -lim2, lim2)
    b2 = jax.random.uniform(k4, (OUT_DIM,), jnp.float32, -lim2, lim2)
    return w1, b1, w2, b2


if __name__ == "__main__":
    key = jax.random.PRNGKey(0)
    key_x, key_p = jax.random.split(key)

    B = 8
    x = jax.random.normal(key_x, (B, IN_DIM), jnp.float32)
    w1, b1, w2, b2 = init_params(key_p)

    out = simple_model_forward(x, w1, b1, w2, b2)
    out = jax.block_until_ready(out)
    assert out.shape == (B, OUT_DIM)

    # Reference: f32 math. Kernel uses f32 operands with f32 accumulation; the
    # small tolerance covers the MXU's default-precision matmul path.
    ref = jnp.maximum(x @ w1 + b1[None, :], 0.0) @ w2 + b2[None, :]
    assert jnp.allclose(out, ref, atol=1e-2, rtol=1e-2), (
        float(jnp.max(jnp.abs(out - ref))))

    print("KERNEL_OK")
</pallas_src>

<mosaic_0001>
module attributes {stable_mosaic.version = 11 : i64} {
  func.func @mlp_kernel(%arg0: i32, %arg1: memref<8x10xf32, #tpu.memory_space<vmem>>, %arg2: memref<10x20xf32, #tpu.memory_space<vmem>>, %arg3: memref<1x20xf32, #tpu.memory_space<vmem>>, %arg4: memref<20x5xf32, #tpu.memory_space<vmem>>, %arg5: memref<1x5xf32, #tpu.memory_space<vmem>>, %arg6: memref<8x5xf32, #tpu.memory_space<vmem>>) attributes {dimension_semantics = [#tpu.dimension_semantics<parallel>], iteration_bounds = array<i64: 1>, scalar_prefetch = 0 : i64, scratch_operands = 0 : i64, tpu.core_type = #tpu.core_type<tc>, window_params = [{transform_indices = @transform_0, window_bounds = array<i64: 8, 10>}, {pipeline_mode = #tpu.pipeline_mode<synchronous>, transform_indices = @transform_1, window_bounds = array<i64: 10, 20>}, {pipeline_mode = #tpu.pipeline_mode<synchronous>, transform_indices = @transform_2, window_bounds = array<i64: 1, 20>}, {pipeline_mode = #tpu.pipeline_mode<synchronous>, transform_indices = @transform_3, window_bounds = array<i64: 20, 5>}, {pipeline_mode = #tpu.pipeline_mode<synchronous>, transform_indices = @transform_4, window_bounds = array<i64: 1, 5>}, {transform_indices = @transform_5, window_bounds = array<i64: 8, 5>}]} {
    %c0 = arith.constant 0 : index
    %c0_0 = arith.constant 0 : index
    %0 = vector.load %arg1[%c0, %c0_0] : memref<8x10xf32, #tpu.memory_space<vmem>>, vector<8x10xf32>
    %c0_1 = arith.constant 0 : index
    %c0_2 = arith.constant 0 : index
    %1 = vector.load %arg2[%c0_1, %c0_2] : memref<10x20xf32, #tpu.memory_space<vmem>>, vector<10x20xf32>
    %cst = arith.constant dense<0.000000e+00> : vector<8x20xf32>
    %2 = tpu.matmul %0, %1, %cst {dimension_numbers = #tpu.dot_dimension_numbers<[1], [0], [0], [1], [0, 0, 1, 1], [], []>} : vector<8x10xf32>, vector<10x20xf32>, vector<8x20xf32> -> vector<8x20xf32>
    %c0_3 = arith.constant 0 : index
    %c0_4 = arith.constant 0 : index
    %3 = vector.load %arg3[%c0_3, %c0_4] : memref<1x20xf32, #tpu.memory_space<vmem>>, vector<1x20xf32>
    %4 = vector.broadcast %3 : vector<1x20xf32> to vector<8x20xf32>
    %5 = arith.addf %2, %4 : vector<8x20xf32>
    %cst_5 = arith.constant 0.000000e+00 : f32
    %6 = vector.broadcast %cst_5 : f32 to vector<8x20xf32>
    %7 = arith.maximumf %5, %6 : vector<8x20xf32>
    %c0_6 = arith.constant 0 : index
    %c0_7 = arith.constant 0 : index
    %8 = vector.load %arg4[%c0_6, %c0_7] : memref<20x5xf32, #tpu.memory_space<vmem>>, vector<20x5xf32>
    %cst_8 = arith.constant dense<0.000000e+00> : vector<8x5xf32>
    %9 = tpu.matmul %7, %8, %cst_8 {dimension_numbers = #tpu.dot_dimension_numbers<[1], [0], [0], [1], [0, 0, 1, 1], [], []>} : vector<8x20xf32>, vector<20x5xf32>, vector<8x5xf32> -> vector<8x5xf32>
    %c0_9 = arith.constant 0 : index
    %c0_10 = arith.constant 0 : index
    %10 = vector.load %arg5[%c0_9, %c0_10] : memref<1x5xf32, #tpu.memory_space<vmem>>, vector<1x5xf32>
    %11 = vector.broadcast %10 : vector<1x5xf32> to vector<8x5xf32>
    %12 = arith.addf %9, %11 : vector<8x5xf32>
    %c0_11 = arith.constant 0 : index
    %c0_12 = arith.constant 0 : index
    %13 = vector.load %arg6[%c0_11, %c0_12] : memref<8x5xf32, #tpu.memory_space<vmem>>, vector<8x5xf32>
    tpu.vector_store %arg6[%c0_11, %c0_12], %12 {strides = array<i32>} : memref<8x5xf32, #tpu.memory_space<vmem>>, vector<8x5xf32>,
    return
  }
  func.func @transform_0(%arg0: i32) -> (i32, i32) {
    %c0_i32 = arith.constant 0 : i32
    %c0_i32_0 = arith.constant 0 : i32
    return %arg0, %c0_i32 : i32, i32
  }
  func.func @transform_1(%arg0: i32) -> (i32, i32) {
    %c0_i32 = arith.constant 0 : i32
    %c0_i32_0 = arith.constant 0 : i32
    %c0_i32_1 = arith.constant 0 : i32
    return %c0_i32, %c0_i32_0 : i32, i32
  }
  func.func @transform_2(%arg0: i32) -> (i32, i32) {
    %c0_i32 = arith.constant 0 : i32
    %c0_i32_0 = arith.constant 0 : i32
    %c0_i32_1 = arith.constant 0 : i32
    return %c0_i32, %c0_i32_0 : i32, i32
  }
  func.func @transform_3(%arg0: i32) -> (i32, i32) {
    %c0_i32 = arith.constant 0 : i32
    %c0_i32_0 = arith.constant 0 : i32
    %c0_i32_1 = arith.constant 0 : i32
    return %c0_i32, %c0_i32_0 : i32, i32
  }
  func.func @transform_4(%arg0: i32) -> (i32, i32) {
    %c0_i32 = arith.constant 0 : i32
    %c0_i32_0 = arith.constant 0 : i32
    %c0_i32_1 = arith.constant 0 : i32
    return %c0_i32, %c0_i32_0 : i32, i32
  }
  func.func @transform_5(%arg0: i32) -> (i32, i32) {
    %c0_i32 = arith.constant 0 : i32
    %c0_i32_0 = arith.constant 0 : i32
    return %arg0, %c0_i32 : i32, i32
  }
}

</mosaic_0001>

<llo_original>
// kernel: tpu_custom_call.1
$region0: #{tpu_custom_call.1}
  #allocation0 [shape = 'u32[]', space=smem, size = 0x4, offset = 0x4, fixed_abs, tag = 'smem constant byte address 0x4 - core index']
  #allocation1 [shape = 'u32[72,128]{1,0:T(1,128)}', space=vmem, size = 0x9000, scoped, tag = 'internal scratch']
  %s0 = inlined_call_operand.vmem [shape: f32[8,10], index: 0, kind: input, shape index: {}]
  %s1 = inlined_call_operand.vmem [shape: f32[10,20], index: 1, kind: input, shape index: {}]
  %s2 = inlined_call_operand.vmem [shape: f32[1,20], index: 2, kind: input, shape index: {}]
  %s3 = inlined_call_operand.vmem [shape: f32[20,5], index: 3, kind: input, shape index: {}]
  %s4 = inlined_call_operand.vmem [shape: f32[1,5], index: 4, kind: input, shape index: {}]
  %s5 = inlined_call_operand.hbm [shape: f32[8,5], index: 5, kind: output, shape index: {}]
  %s6 = sld [smem:[#allocation0]]
  $region30: #{tpu_custom_call.1} parent=0
    _
  %s8 = ssub.s32 1, %s6
  %s9 = scalar_select 0, %s8, %s6
  $region1: #{tpu_custom_call.1} parent=0
    #allocation2 [shape = 'u8[4096]{0}', space=vmem, size = 0x1000, scoped, tag = 'output window, operand 0, single buffered']
    #allocation3 [shape = 's32[1]{0}', space=sflag, size = 0x4, scoped, tag = 'scoped memory for tpu_custom_call.1']
    %10 = vsyncpa [#allocation3], 0
    // Predicated region
    $region2: #{tpu_custom_call.1} parent=1 // pred_check
      _
    $region3: #{tpu_custom_call.1} parent=1 // pred_check_branch
      %12 = sbr.rel (0) target = $region5
    $region4: #{tpu_custom_call.1} parent=1 // pred_region
      _
    $region5: #{tpu_custom_call.1} parent=1 // pred_fallthru
      _
    // Predicated region
    $region6: #{tpu_custom_call.1} parent=1 // pred_check
      _
    $region7: #{tpu_custom_call.1} parent=1 // pred_check_branch
      %14 = sbr.rel (0) target = $region9
    $region8: #{tpu_custom_call.1} parent=1 // pred_region
      _
    $region9: #{tpu_custom_call.1} parent=1 // pred_fallthru
      _
    // Predicated region
    $region10: #{tpu_custom_call.1} parent=1 // pred_check
      _
    $region11: #{tpu_custom_call.1} parent=1 // pred_check_branch
      %16 = sbr.rel (0) target = $region13
    $region12: #{tpu_custom_call.1} parent=1 // pred_region
      _
    $region13: #{tpu_custom_call.1} parent=1 // pred_fallthru
      _
    // Predicated region
    $region14: #{tpu_custom_call.1} parent=1 // pred_check
      _
    $region15: #{tpu_custom_call.1} parent=1 // pred_check_branch
      %18 = sbr.rel (0) target = $region17
    $region16: #{tpu_custom_call.1} parent=1 // pred_region
      _
    $region17: #{tpu_custom_call.1} parent=1 // pred_fallthru
      _
    // Predicated region
    $region18: #{tpu_custom_call.1} parent=1 // pred_check
      _
    $region19: #{tpu_custom_call.1} parent=1 // pred_check_branch
      %20 = sbr.rel (0) target = $region21
    $region20: #{tpu_custom_call.1} parent=1 // pred_region
      _
    $region21: #{tpu_custom_call.1} parent=1 // pred_fallthru
      _
    %v21 = vld [vmem:[%s0] sm:$0xff]
    %v22 = vld [vmem:[%s1] sm:$0xff]
    %v23 = vld [vmem:[%s1 + $0x8] sm:$0x3]
    %v24 = vld [vmem:[%s2] sm:$0x1]
    %v26 = vperm.slane %v24, 0
    %vm28 = vcmask 80896
    %v30 = vsel %vm28, %v21, 0
    %vm32 = vcmask 1041408
    %v34 = vsel %vm32, %v23, 0
    %36 = vmatpush.msra.mxu0 0.0
    %37 = vmatpush.msra.mxu0 0.0
    %38 = vmatpush.msra.mxu0 0.0
    %39 = vmatpush.msra.mxu0 0.0
    %40 = vmatpush.msra.mxu0 0.0
    %41 = vmatpush.msra.mxu0 0.0
    %42 = vmatpush.msra.mxu0 0.0
    %43 = vmatpush.msra.mxu0 0.0
    %44 = vmatpush.msra.mxu0 0.0
    %45 = vmatpush.msra.mxu0 0.0
    %46 = vmatpush.msra.mxu0 0.0
    %47 = vmatpush.msra.mxu0 0.0
    %48 = vmatpush.msra.mxu0 0.0
    %49 = vmatpush.msra.mxu0 0.0
    %50 = vmatpush.msra.mxu0 %v34
    %51 = vmatpush.msra.mxu0 %v22
    %52 = vmatmul.f32.gmra.mxu0 %v30
    %v53 = vpop.f32.mrf.mxu0
    %v54 = vadd.f32 %v26, %v53
    %55 = vdwg.mxu0
    %v56 = vmax.f32 %v54, 0.0
    %v57 = vld [vmem:[%s3] sm:$0xff]
    %v58 = vld [vmem:[%s3 + $0x8] sm:$0xff]
    %v59 = vld [vmem:[%s3 + $0x10] sm:$0xf]
    %v60 = vld [vmem:[%s4] sm:$0x1]
    %v62 = vperm.slane %v60, 0
    %vm64 = vcmask 162816
    %v66 = vsel %vm64, %v56, 0
    %vm68 = vcmask 1043456
    %v70 = vsel %vm68, %v59, 0
    %72 = vmatpush.msra.mxu0 0.0
    %73 = vmatpush.msra.mxu0 0.0
    %74 = vmatpush.msra.mxu0 0.0
    %75 = vmatpush.msra.mxu0 0.0
    %76 = vmatpush.msra.mxu0 0.0
    %77 = vmatpush.msra.mxu0 0.0
    %78 = vmatpush.msra.mxu0 0.0
    %79 = vmatpush.msra.mxu0 0.0
    %80 = vmatpush.msra.mxu0 0.0
    %81 = vmatpush.msra.mxu0 0.0
    %82 = vmatpush.msra.mxu0 0.0
    %83 = vmatpush.msra.mxu0 0.0
    %84 = vmatpush.msra.mxu0 0.0
    %85 = vmatpush.msra.mxu0 %v70
    %86 = vmatpush.msra.mxu0 %v58
    %87 = vmatpush.msra.mxu0 %v57
    %88 = vmatmul.f32.gmra.mxu0 %v66
    %v89 = vpop.f32.mrf.mxu0
    %v90 = vadd.f32 %v62, %v89
    %91 = vdwg.mxu0
    %vm92 = vcmask 39936
    %93 = vst.msk [vmem:[#allocation2] sm:$0xff] %vm92, %v90
    // Predicated region
    $region22: #{tpu_custom_call.1} parent=1 // pred_check
      _
    $region23: #{tpu_custom_call.1} parent=1 // pred_check_branch
      %95 = sbr.rel (0) target = $region25
    $region24: #{tpu_custom_call.1} parent=1 // pred_region
      %97 = vsyncadd [#allocation3], 0
      %s99 = sshll.u32 [#allocation2], 4
      %s100 = int_to_ptr.vmem [resolvable:$true] %s99
      %s101 = sshll.u32 %s5, 4
      %s102 = int_to_ptr.hbm [resolvable:$true] %s101
      %104 = dma.vmem_to_hbm [thread:$0]  %s100, 128, %s102, [#allocation3]
    $region25: #{tpu_custom_call.1} parent=1 // pred_fallthru
      _
    // Predicated region
    $region26: #{tpu_custom_call.1} parent=1 // pred_check
      _
    $region27: #{tpu_custom_call.1} parent=1 // pred_check_branch
      %106 = sbr.rel (0) target = $region29
    $region28: #{tpu_custom_call.1} parent=1 // pred_region
      %108 = dma.done [#allocation3], 128
    $region29: #{tpu_custom_call.1} parent=1 // pred_fallthru
      _
    %109 = vsyncpa [#allocation3], 1

</llo_original>
